<compile_context>
chip_gen: v7x
topology: tpu7x:2x2x1
jax: 0.10.0
libtpu: 0.0.40
codegen_flags: <defaults>
</compile_context>

<pallas_src>
import jax
import jax.numpy as jnp
from jax.experimental import pallas as pl
from jax.experimental.pallas import tpu as pltpu

EPS = 1e-5  # nn.LayerNorm default eps


def ada_final_layer_kernel(x_ref, eff_shift_ref, eff_scale_ref, wlin_ref, blin_ref, o_ref):
    # x_ref: (TS, H)   eff_shift/eff_scale: (1, H)
    # wlin_ref: (H, OUT)   blin_ref: (1, OUT)   o_ref: (TS, OUT)

    x = x_ref[...].astype(jnp.float32)                       # (TS, H)

    # One-pass LayerNorm statistics (no centered temp is materialized).
    mean = jnp.mean(x, axis=-1, keepdims=True)               # (TS, 1)
    mean_sq = jnp.mean(x * x, axis=-1, keepdims=True)        # (TS, 1)
    var = jnp.maximum(mean_sq - mean * mean, 0.0)
    rstd = jax.lax.rsqrt(var + EPS)                          # (TS, 1)

    es = eff_scale_ref[...].astype(jnp.float32)              # (1, H) = gamma*(1+scale)
    eb = eff_shift_ref[...].astype(jnp.float32)              # (1, H) = beta*(1+scale)+shift

    # Fused LayerNorm + modulate:  y = (x-mean)*rstd*es + eb  =  x*a + (eb - mean*a)
    a = rstd * es                                            # (TS, H)
    y = x * a + (eb - mean * a)                              # (TS, H), f32

    # Final projection hidden -> out_channels on the MXU, f32 accumulation.
    out = jnp.dot(y.astype(wlin_ref.dtype), wlin_ref[...],
                  preferred_element_type=jnp.float32)
    o_ref[...] = (out + blin_ref[...].astype(jnp.float32)).astype(o_ref.dtype)


def _vmem_capacity():
    try:
        return int(pltpu.get_tpu_info().vmem_capacity_bytes)
    except Exception:
        return 64 << 20  # conservative: v7x per-TensorCore VMEM


def _tile_vmem_bytes(ts, H, out_ch, x_itemsize, w_itemsize):
    """Estimated VMEM working set for one grid step (incl. pipeline buffers & f32 temps)."""
    b = 2 * ts * H * x_itemsize                 # x tile, double-buffered
    b += 2 * ts * out_ch * x_itemsize           # output tile, double-buffered
    b += 2 * 2 * H * 4                          # eff_shift + eff_scale (f32), double-buffered
    b += 2 * (H * out_ch + out_ch) * w_itemsize  # resident weight + bias (pipeline allocates 2 bufs)
    b += 3 * ts * H * 4                         # f32 intermediates (x_f32 + elementwise chain)
    b += ts * H * w_itemsize                    # matmul LHS operand in weight dtype
    b += ts * out_ch * 4                        # f32 matmul accumulator
    return b


def _choose_seq_tile(B, S8, H, out_ch, x_itemsize, w_itemsize, budget):
    """Largest sequence tile (multiple of 8, divides S8) whose working set fits the budget."""
    target = 1024 if x_itemsize <= 2 else 512
    target = max(8, (min(target, S8) // 8) * 8)
    ts = 8  # always divides S8 (S8 is a multiple of 8)
    for cand in range(target, 7, -8):
        if S8 % cand == 0 and _tile_vmem_bytes(cand, H, out_ch, x_itemsize, w_itemsize) <= budget:
            ts = cand
            break
    # Give each TensorCore a few grid steps (v7x megacore balance) when the grid is tiny.
    while B * (S8 // ts) < 4 and ts >= 512 and (ts // 2) % 8 == 0 and S8 % (ts // 2) == 0:
        ts //= 2
    return ts


def ada_transformer_final_layer(x, c, gamma, beta, w_ada, b_ada, w_lin, b_lin, *,
                                matmul_dtype=None):
    """x: [B,S,H], c: [B,cond_dim], w_ada: [cond_dim,2H], w_lin: [H,out_ch]."""
    B, S, H = x.shape
    out_ch = w_lin.shape[1]
    x_itemsize = jnp.dtype(x.dtype).itemsize

    # --- adaLN modulation GEMM in plain XLA + fold of the whole affine into two vectors ---
    mod = (c @ w_ada + b_ada).astype(jnp.float32)                     # [B, 2H]
    one_plus_scale = 1.0 + mod[:, H:]                                 # [B, H]
    eff_scale = (gamma.astype(jnp.float32)[None, :] * one_plus_scale).reshape(B, 1, H)
    eff_shift = (beta.astype(jnp.float32)[None, :] * one_plus_scale
                 + mod[:, :H]).reshape(B, 1, H)

    # Optional reduced-precision MXU path for production shapes (e.g. jnp.bfloat16).
    if matmul_dtype is not None:
        w_lin = w_lin.astype(matmul_dtype)
    w_itemsize = jnp.dtype(w_lin.dtype).itemsize
    b_lin2 = b_lin.reshape(1, out_ch).astype(jnp.float32)

    # --- sequence dim padded to a multiple of 8 (sublane constraint); never an unbounded block ---
    S8 = ((S + 7) // 8) * 8
    x_in = x if S8 == S else jnp.pad(x, ((0, 0), (0, S8 - S), (0, 0)))

    # --- generation-aware tile choice + VMEM limit (accounts for f32 temps & matmul operands) ---
    capacity = _vmem_capacity()
    budget = min(28 << 20, capacity // 2)
    TS = _choose_seq_tile(B, S8, H, out_ch, x_itemsize, w_itemsize, budget)
    n_s = S8 // TS

    need = _tile_vmem_bytes(TS, H, out_ch, x_itemsize, w_itemsize)
    vmem_limit = int(1.2 * need) + (2 << 20)
    vmem_limit = max(vmem_limit, 16 << 20)
    vmem_limit = min(vmem_limit, int(0.625 * capacity))   # <=40 MiB on a 64 MiB v7x TC

    cost = pl.CostEstimate(
        flops=int(2 * B * S8 * H * out_ch + 10 * B * S8 * H),
        transcendentals=int(B * S8),
        bytes_accessed=int(B * S8 * (H + out_ch) * x_itemsize
                           + (H + 1) * out_ch * w_itemsize + 2 * B * H * 4),
    )

    out = pl.pallas_call(
        ada_final_layer_kernel,
        out_shape=jax.ShapeDtypeStruct((B, S8, out_ch), x.dtype),
        grid=(B, n_s),
        in_specs=[
            pl.BlockSpec((pl.Squeezed(), TS, H), lambda b, s: (b, s, 0)),   # x tile
            pl.BlockSpec((pl.Squeezed(), 1, H), lambda b, s: (b, 0, 0)),    # eff_shift (per-batch)
            pl.BlockSpec((pl.Squeezed(), 1, H), lambda b, s: (b, 0, 0)),    # eff_scale (per-batch)
            pl.BlockSpec((H, out_ch), lambda b, s: (0, 0)),                 # final weight (pre-T)
            pl.BlockSpec((1, out_ch), lambda b, s: (0, 0)),                 # final bias
        ],
        out_specs=pl.BlockSpec((pl.Squeezed(), TS, out_ch), lambda b, s: (b, s, 0)),
        compiler_params=pltpu.CompilerParams(
            dimension_semantics=("parallel", "parallel"),
            vmem_limit_bytes=vmem_limit,
        ),
        cost_estimate=cost,
    )(x_in, eff_shift, eff_scale, w_lin, b_lin2)

    return out if S8 == S else out[:, :S, :]


def reference(x, c, gamma, beta, w_ada, b_ada, w_lin, b_lin):
    mod = c @ w_ada + b_ada                       # [B, 2H]
    H = x.shape[-1]
    shift = mod[:, None, :H]                      # [B, 1, H]
    scale = mod[:, None, H:]                      # [B, 1, H]
    mean = jnp.mean(x, axis=-1, keepdims=True)
    var = jnp.mean((x - mean) ** 2, axis=-1, keepdims=True)
    y = (x - mean) / jnp.sqrt(var + EPS) * gamma + beta
    y = y * (1.0 + scale) + shift
    return y @ w_lin + b_lin


if __name__ == "__main__":
    base_key = jax.random.PRNGKey(0)

    def run_case(B, S, H, cond_dim, out_ch, dtype, tol):
        keys = jax.random.split(jax.random.fold_in(base_key, S * H + out_ch), 6)
        x = jax.random.normal(keys[0], (B, S, H), dtype=dtype)
        c = jax.random.normal(keys[1], (B, cond_dim), dtype=dtype)
        gamma = jnp.ones((H,), dtype)
        beta = jnp.zeros((H,), dtype)
        # NOTE: the PyTorch __init__ zero-inits these linears (output trivially zero);
        # small deterministic random values are used so the kernel is actually exercised.
        w_ada = (0.02 * jax.random.normal(keys[2], (cond_dim, 2 * H))).astype(dtype)
        b_ada = (0.02 * jax.random.normal(keys[3], (2 * H,))).astype(dtype)
        w_lin = (0.02 * jax.random.normal(keys[4], (H, out_ch))).astype(dtype)
        b_lin = (0.02 * jax.random.normal(keys[5], (out_ch,))).astype(dtype)

        out = jax.block_until_ready(
            ada_transformer_final_layer(x, c, gamma, beta, w_ada, b_ada, w_lin, b_lin))
        ref = reference(x, c, gamma, beta, w_ada, b_ada, w_lin, b_lin)
        assert out.shape == (B, S, out_ch)
        assert jnp.allclose(out.astype(jnp.float32), ref.astype(jnp.float32),
                            atol=tol, rtol=tol), f"mismatch vs reference at {(B, S, H, out_ch)}"

    # Small primary case (single tile, small hidden).
    run_case(2, 8, 32, 16, 8, jnp.float32, 1e-5)
    # Multi-tile grid + odd sequence length (exercises S-padding) + masked-lane output store.
    run_case(2, 1023, 128, 64, 32, jnp.float32, 1e-4)

    print("KERNEL_OK")
</pallas_src>

<mosaic_0001>
module attributes {stable_mosaic.version = 11 : i64} {
  func.func @ada_final_layer_kernel(%arg0: i32, %arg1: i32, %arg2: memref<1x8x32xf32, #tpu.memory_space<vmem>>, %arg3: memref<1x1x32xf32, #tpu.memory_space<vmem>>, %arg4: memref<1x1x32xf32, #tpu.memory_space<vmem>>, %arg5: memref<32x8xf32, #tpu.memory_space<vmem>>, %arg6: memref<1x8xf32, #tpu.memory_space<vmem>>, %arg7: memref<1x8x8xf32, #tpu.memory_space<vmem>>) attributes {dimension_semantics = [#tpu.dimension_semantics<parallel>, #tpu.dimension_semantics<parallel>], iteration_bounds = array<i64: 2, 1>, scalar_prefetch = 0 : i64, scratch_operands = 0 : i64, tpu.core_type = #tpu.core_type<tc>, window_params = [{transform_indices = @transform_0, window_bounds = array<i64: 1, 8, 32>}, {transform_indices = @transform_1, window_bounds = array<i64: 1, 1, 32>}, {transform_indices = @transform_2, window_bounds = array<i64: 1, 1, 32>}, {pipeline_mode = #tpu.pipeline_mode<synchronous>, transform_indices = @transform_3, window_bounds = array<i64: 32, 8>}, {pipeline_mode = #tpu.pipeline_mode<synchronous>, transform_indices = @transform_4, window_bounds = array<i64: 1, 8>}, {transform_indices = @transform_5, window_bounds = array<i64: 1, 8, 8>}]} {
    %c0 = arith.constant 0 : index
    %c0_0 = arith.constant 0 : index
    %c0_1 = arith.constant 0 : index
    %0 = vector.load %arg2[%c0, %c0_0, %c0_1] : memref<1x8x32xf32, #tpu.memory_space<vmem>>, vector<1x8x32xf32>
    %1 = vector.shape_cast %0 : vector<1x8x32xf32> to vector<8x32xf32>
    %cst = arith.constant dense<0.000000e+00> : vector<8xf32>
    %2 = vector.multi_reduction <add>, %1, %cst [1] : vector<8x32xf32> to vector<8xf32>
    %3 = vector.shape_cast %2 : vector<8xf32> to vector<8x1xf32>
    %cst_2 = arith.constant 3.200000e+01 : f32
    %4 = vector.broadcast %cst_2 : f32 to vector<8x1xf32>
    %5 = arith.divf %3, %4 : vector<8x1xf32>
    %6 = arith.mulf %1, %1 : vector<8x32xf32>
    %cst_3 = arith.constant dense<0.000000e+00> : vector<8xf32>
    %7 = vector.multi_reduction <add>, %6, %cst_3 [1] : vector<8x32xf32> to vector<8xf32>
    %8 = vector.shape_cast %7 : vector<8xf32> to vector<8x1xf32>
    %cst_4 = arith.constant 3.200000e+01 : f32
    %9 = vector.broadcast %cst_4 : f32 to vector<8x1xf32>
    %10 = arith.divf %8, %9 : vector<8x1xf32>
    %11 = arith.mulf %5, %5 : vector<8x1xf32>
    %12 = arith.subf %10, %11 : vector<8x1xf32>
    %cst_5 = arith.constant 0.000000e+00 : f32
    %13 = vector.broadcast %cst_5 : f32 to vector<8x1xf32>
    %14 = arith.maximumf %12, %13 : vector<8x1xf32>
    %cst_6 = arith.constant 9.99999974E-6 : f32
    %15 = vector.broadcast %cst_6 : f32 to vector<8x1xf32>
    %16 = arith.addf %14, %15 : vector<8x1xf32>
    %17 = math.rsqrt %16 : vector<8x1xf32>
    %c0_7 = arith.constant 0 : index
    %c0_8 = arith.constant 0 : index
    %c0_9 = arith.constant 0 : index
    %18 = vector.load %arg4[%c0_7, %c0_8, %c0_9] : memref<1x1x32xf32, #tpu.memory_space<vmem>>, vector<1x1x32xf32>
    %19 = vector.shape_cast %18 : vector<1x1x32xf32> to vector<1x32xf32>
    %c0_10 = arith.constant 0 : index
    %c0_11 = arith.constant 0 : index
    %c0_12 = arith.constant 0 : index
    %20 = vector.load %arg3[%c0_10, %c0_11, %c0_12] : memref<1x1x32xf32, #tpu.memory_space<vmem>>, vector<1x1x32xf32>
    %21 = vector.shape_cast %20 : vector<1x1x32xf32> to vector<1x32xf32>
    %22 = vector.broadcast %17 : vector<8x1xf32> to vector<8x32xf32>
    %23 = vector.broadcast %19 : vector<1x32xf32> to vector<8x32xf32>
    %24 = arith.mulf %22, %23 : vector<8x32xf32>
    %25 = arith.mulf %1, %24 : vector<8x32xf32>
    %26 = vector.broadcast %5 : vector<8x1xf32> to vector<8x32xf32>
    %27 = arith.mulf %26, %24 : vector<8x32xf32>
    %28 = vector.broadcast %21 : vector<1x32xf32> to vector<8x32xf32>
    %29 = arith.subf %28, %27 : vector<8x32xf32>
    %30 = arith.addf %25, %29 : vector<8x32xf32>
    %c0_13 = arith.constant 0 : index
    %c0_14 = arith.constant 0 : index
    %31 = vector.load %arg5[%c0_13, %c0_14] : memref<32x8xf32, #tpu.memory_space<vmem>>, vector<32x8xf32>
    %cst_15 = arith.constant dense<0.000000e+00> : vector<8x8xf32>
    %32 = tpu.matmul %30, %31, %cst_15 {dimension_numbers = #tpu.dot_dimension_numbers<[1], [0], [0], [1], [0, 0, 1, 1], [], []>} : vector<8x32xf32>, vector<32x8xf32>, vector<8x8xf32> -> vector<8x8xf32>
    %c0_16 = arith.constant 0 : index
    %c0_17 = arith.constant 0 : index
    %33 = vector.load %arg6[%c0_16, %c0_17] : memref<1x8xf32, #tpu.memory_space<vmem>>, vector<1x8xf32>
    %34 = vector.broadcast %33 : vector<1x8xf32> to vector<8x8xf32>
    %35 = arith.addf %32, %34 : vector<8x8xf32>
    %c0_18 = arith.constant 0 : index
    %c0_19 = arith.constant 0 : index
    %c0_20 = arith.constant 0 : index
    %36 = vector.load %arg7[%c0_18, %c0_19, %c0_20] : memref<1x8x8xf32, #tpu.memory_space<vmem>>, vector<1x8x8xf32>
    %37 = vector.shape_cast %36 : vector<1x8x8xf32> to vector<8x8xf32>
    %38 = vector.shape_cast %35 : vector<8x8xf32> to vector<1x8x8xf32>
    tpu.vector_store %arg7[%c0_18, %c0_19, %c0_20], %38 {strides = array<i32>} : memref<1x8x8xf32, #tpu.memory_space<vmem>>, vector<1x8x8xf32>,
    return
  }
  func.func @transform_0(%arg0: i32, %arg1: i32) -> (i32, i32, i32) {
    %c0_i32 = arith.constant 0 : i32
    %c0_i32_0 = arith.constant 0 : i32
    return %arg0, %arg1, %c0_i32 : i32, i32, i32
  }
  func.func @transform_1(%arg0: i32, %arg1: i32) -> (i32, i32, i32) {
    %c0_i32 = arith.constant 0 : i32
    %c0_i32_0 = arith.constant 0 : i32
    %c0_i32_1 = arith.constant 0 : i32
    return %arg0, %c0_i32, %c0_i32_0 : i32, i32, i32
  }
  func.func @transform_2(%arg0: i32, %arg1: i32) -> (i32, i32, i32) {
    %c0_i32 = arith.constant 0 : i32
    %c0_i32_0 = arith.constant 0 : i32
    %c0_i32_1 = arith.constant 0 : i32
    return %arg0, %c0_i32, %c0_i32_0 : i32, i32, i32
  }
  func.func @transform_3(%arg0: i32, %arg1: i32) -> (i32, i32) {
    %c0_i32 = arith.constant 0 : i32
    %c0_i32_0 = arith.constant 0 : i32
    %c0_i32_1 = arith.constant 0 : i32
    return %c0_i32, %c0_i32_0 : i32, i32
  }
  func.func @transform_4(%arg0: i32, %arg1: i32) -> (i32, i32) {
    %c0_i32 = arith.constant 0 : i32
    %c0_i32_0 = arith.constant 0 : i32
    %c0_i32_1 = arith.constant 0 : i32
    return %c0_i32, %c0_i32_0 : i32, i32
  }
  func.func @transform_5(%arg0: i32, %arg1: i32) -> (i32, i32, i32) {
    %c0_i32 = arith.constant 0 : i32
    %c0_i32_0 = arith.constant 0 : i32
    return %arg0, %arg1, %c0_i32 : i32, i32, i32
  }
}

</mosaic_0001>

<llo_original>
// kernel: tpu_custom_call.1
$region0: #{tpu_custom_call.1}
  #allocation0 [shape = 'u32[]', space=smem, size = 0x4, offset = 0x4, fixed_abs, tag = 'smem constant byte address 0x4 - core index']
  #allocation1 [shape = 'u32[144,128]{1,0:T(1,128)}', space=vmem, size = 0x12000, scoped, tag = 'internal scratch']
  %s0 = inlined_call_operand.vmem [shape: f32[2,8,32], index: 0, kind: input, shape index: {}]
  %s1 = inlined_call_operand.vmem [shape: f32[2,1,32], index: 1, kind: input, shape index: {}]
  %s2 = inlined_call_operand.vmem [shape: f32[2,1,32], index: 2, kind: input, shape index: {}]
  %s3 = inlined_call_operand.vmem [shape: f32[32,8], index: 3, kind: input, shape index: {}]
  %s4 = inlined_call_operand.vmem [shape: f32[1,8], index: 4, kind: input, shape index: {}]
  %s5 = inlined_call_operand.hbm [shape: f32[2,8,8], index: 5, kind: output, shape index: {}]
  %s6 = sld [smem:[#allocation0]]
  $region53: #{tpu_custom_call.1} parent=0
    _
  %s8 = ssub.s32 1, %s6
  %s9 = scalar_select 0, %s8, %s6
  $region1: #{tpu_custom_call.1} parent=0
    #allocation2 [shape = 'u8[8192]{0}', space=vmem, size = 0x2000, scoped, tag = 'output window, operand 0']
    #allocation3 [shape = 's32[2]{0}', space=sflag, size = 0x8, scoped, tag = 'scoped memory for tpu_custom_call.1']
    %10 = vsyncpa [#allocation3], 0
    %s11 = scalar_lea.sflag [#allocation3], 1
    %12 = vsyncpa %s11, 0
    loop: start=0, step=1, limit=4
    $region2: #{tpu_custom_call.1} parent=1 // loop_pre_header
      _
    $region3: #{tpu_custom_call.1} parent=1 // loop_header
      %s14 = sphi 0, %s18
      %p15 = scmp.ge.s32.totalorder %s14, 4
      %s21 = sphi 0, %s33
      %s22 = sphi 0, %s29
      %s23 = sphi 0, %s21
      %s24 = sphi 0, %s22
      %s25 = sphi 0, %s23
      %s26 = sphi 0, %s24
      %s38 = sphi 0, %s40
      %s41 = sphi 0, %s38
      %s42 = sphi 0, %s41
      %s58 = sphi 0, %s42
      %s64 = sphi 0, %s66
      %s67 = sphi 0, %s64
      %s68 = sphi 0, %s67
      %s84 = sphi 0, %s68
      %s90 = sphi 0, %s92
      %s93 = sphi 0, %s90
      %s94 = sphi 0, %s93
      %s110 = sphi 0, %s94
      %s114 = sphi 0, %s114
      %s116 = sphi 0, %s114
      %s117 = sphi 0, %s116
      %s131 = sphi 0, %s117
      %s135 = sphi 0, %s135
      %s137 = sphi 0, %s135
      %s138 = sphi 0, %s137
      %s152 = sphi 0, %s138
      %s160 = sphi 0, %s162
      %s163 = sphi 0, %s160
      %s164 = sphi 0, %s163
      %s180 = sphi 0, %s164
    $region4: #{tpu_custom_call.1} parent=1 // loop_header_branch
      %17 = sbr.rel (%p15) target = $region8
    $region5: #{tpu_custom_call.1} parent=1 // loop_body
      %s19 = ssub.s32 %s14, 1
      %s20 = ssub.s32 %s14, 2
      %s27 = sadd.s32 1, %s22
      %p28 = scmp.ge.s32.totalorder %s27, 1
      %s29 = scalar_select %p28, 0, %s27
      %s30 = sadd.s32 1, %s21
      %s31 = scalar_select %p28, %s30, %s21
      %p32 = scmp.ge.s32.totalorder %s31, 2
      %s33 = scalar_select %p32, 0, %s31
      %s34 = ssub.s32 %s21, %s33
      %s35 = ssub.s32 %s22, %s29
      %s36 = sor.u32 %s34, %s35
      %p37 = scmp.eq.s32.totalorder %s36, 0
      %s39 = sadd.s32 %s38, 1
      %s40 = scalar_select %p37, %s38, %s39
      %p43 = pneg %p37
      %p44 = scmp.eq.s32.totalorder %s14, 1
      %p45 = por %p43, %p44
      %p46 = scmp.ne.s32.totalorder %s38, %s41
      %p47 = scmp.eq.s32.totalorder %s14, 0
      %p48 = por %p46, %p47
      %p49 = scmp.ne.s32.totalorder %s38, %s41
      %p50 = scmp.eq.s32.totalorder %s19, 1
      %p51 = por %p49, %p50
      %p52 = scmp.ne.s32.totalorder %s41, %s42
      %p53 = scmp.eq.s32.totalorder %s19, 0
      %p54 = por %p52, %p53
      %p55 = scmp.ne.s32.totalorder %s41, %s42
      %p56 = scmp.eq.s32.totalorder %s20, 1
      %p57 = por %p55, %p56
      %p59 = scmp.ne.s32.totalorder %s42, %s58
      %p60 = scmp.eq.s32.totalorder %s20, 0
      %p61 = por %p59, %p60
      %s62 = ssub.s32 %s21, %s33
      %p63 = scmp.eq.s32.totalorder %s62, 0
      %s65 = sadd.s32 %s64, 1
      %s66 = scalar_select %p63, %s64, %s65
      %p69 = pneg %p63
      %p70 = scmp.eq.s32.totalorder %s14, 1
      %p71 = por %p69, %p70
      %p72 = scmp.ne.s32.totalorder %s64, %s67
      %p73 = scmp.eq.s32.totalorder %s14, 0
      %p74 = por %p72, %p73
      %p75 = scmp.ne.s32.totalorder %s64, %s67
      %p76 = scmp.eq.s32.totalorder %s19, 1
      %p77 = por %p75, %p76
      %p78 = scmp.ne.s32.totalorder %s67, %s68
      %p79 = scmp.eq.s32.totalorder %s19, 0
      %p80 = por %p78, %p79
      %p81 = scmp.ne.s32.totalorder %s67, %s68
      %p82 = scmp.eq.s32.totalorder %s20, 1
      %p83 = por %p81, %p82
      %p85 = scmp.ne.s32.totalorder %s68, %s84
      %p86 = scmp.eq.s32.totalorder %s20, 0
      %p87 = por %p85, %p86
      %s88 = ssub.s32 %s21, %s33
      %p89 = scmp.eq.s32.totalorder %s88, 0
      %s91 = sadd.s32 %s90, 1
      %s92 = scalar_select %p89, %s90, %s91
      %p95 = pneg %p89
      %p96 = scmp.eq.s32.totalorder %s14, 1
      %p97 = por %p95, %p96
      %p98 = scmp.ne.s32.totalorder %s90, %s93
      %p99 = scmp.eq.s32.totalorder %s14, 0
      %p100 = por %p98, %p99
      %p101 = scmp.ne.s32.totalorder %s90, %s93
      %p102 = scmp.eq.s32.totalorder %s19, 1
      %p103 = por %p101, %p102
      %p104 = scmp.ne.s32.totalorder %s93, %s94
      %p105 = scmp.eq.s32.totalorder %s19, 0
      %p106 = por %p104, %p105
      %p107 = scmp.ne.s32.totalorder %s93, %s94
      %p108 = scmp.eq.s32.totalorder %s20, 1
      %p109 = por %p107, %p108
      %p111 = scmp.ne.s32.totalorder %s94, %s110
      %p112 = scmp.eq.s32.totalorder %s20, 0
      %p113 = por %p111, %p112
      %s115 = sadd.s32 %s114, 1
      %p118 = scmp.eq.s32.totalorder %s14, 1
      %p119 = scmp.ne.s32.totalorder %s114, %s116
      %p120 = scmp.eq.s32.totalorder %s14, 0
      %p121 = por %p119, %p120
      %p122 = scmp.ne.s32.totalorder %s114, %s116
      %p123 = scmp.eq.s32.totalorder %s19, 1
      %p124 = por %p122, %p123
      %p125 = scmp.ne.s32.totalorder %s116, %s117
      %p126 = scmp.eq.s32.totalorder %s19, 0
      %p127 = por %p125, %p126
      %p128 = scmp.ne.s32.totalorder %s116, %s117
      %p129 = scmp.eq.s32.totalorder %s20, 1
      %p130 = por %p128, %p129
      %p132 = scmp.ne.s32.totalorder %s117, %s131
      %p133 = scmp.eq.s32.totalorder %s20, 0
      %p134 = por %p132, %p133
      %s136 = sadd.s32 %s135, 1
      %p139 = scmp.eq.s32.totalorder %s14, 1
      %p140 = scmp.ne.s32.totalorder %s135, %s137
      %p141 = scmp.eq.s32.totalorder %s14, 0
      %p142 = por %p140, %p141
      %p143 = scmp.ne.s32.totalorder %s135, %s137
      %p144 = scmp.eq.s32.totalorder %s19, 1
      %p145 = por %p143, %p144
      %p146 = scmp.ne.s32.totalorder %s137, %s138
      %p147 = scmp.eq.s32.totalorder %s19, 0
      %p148 = por %p146, %p147
      %p149 = scmp.ne.s32.totalorder %s137, %s138
      %p150 = scmp.eq.s32.totalorder %s20, 1
      %p151 = por %p149, %p150
      %p153 = scmp.ne.s32.totalorder %s138, %s152
      %p154 = scmp.eq.s32.totalorder %s20, 0
      %p155 = por %p153, %p154
      %s156 = ssub.s32 %s21, %s33
      %s157 = ssub.s32 %s22, %s29
      %s158 = sor.u32 %s156, %s157
      %p159 = scmp.eq.s32.totalorder %s158, 0
      %s161 = sadd.s32 %s160, 1
      %s162 = scalar_select %p159, %s160, %s161
      %p165 = pneg %p159
      %p166 = scmp.eq.s32.totalorder %s14, 1
      %p167 = por %p165, %p166
      %p168 = scmp.ne.s32.totalorder %s160, %s163
      %p169 = scmp.eq.s32.totalorder %s14, 0
      %p170 = por %p168, %p169
      %p171 = scmp.ne.s32.totalorder %s160, %s163
      %p172 = scmp.eq.s32.totalorder %s19, 1
      %p173 = por %p171, %p172
      %p174 = scmp.ne.s32.totalorder %s163, %s164
      %p175 = scmp.eq.s32.totalorder %s19, 0
      %p176 = por %p174, %p175
      %p177 = scmp.ne.s32.totalorder %s163, %s164
      %p178 = scmp.eq.s32.totalorder %s20, 1
      %p179 = por %p177, %p178
      %p181 = scmp.ne.s32.totalorder %s164, %s180
      %p182 = scmp.eq.s32.totalorder %s20, 0
      %p183 = por %p181, %p182
      %p184 = scmp.le.s32.totalorder 1, %s14
      %p185 = scmp.lt.s32.totalorder %s14, 3
      %p186 = pnand %p184, %p185
      %p187 = pneg %p186
      // Predicated region
      $region9: #{tpu_custom_call.1} parent=5 // pred_check
        _
      $region10: #{tpu_custom_call.1} parent=5 // pred_check_branch
        %189 = sbr.rel (%p186) target = $region12
      $region11: #{tpu_custom_call.1} parent=5 // pred_region
        %s190 = ssub.s32 %s14, 1
        // Predicated region
        $region13: #{tpu_custom_call.1} parent=11 // pred_check
          %p191 = pneg %p127
        $region14: #{tpu_custom_call.1} parent=11 // pred_check_branch
          %193 = sbr.rel (%p191) target = $region16
        $region15: #{tpu_custom_call.1} parent=11 // pred_region
          _
        $region16: #{tpu_custom_call.1} parent=11 // pred_fallthru
          _
        // Predicated region
        $region17: #{tpu_custom_call.1} parent=11 // pred_check
          %p194 = pneg %p148
        $region18: #{tpu_custom_call.1} parent=11 // pred_check_branch
          %196 = sbr.rel (%p194) target = $region20
        $region19: #{tpu_custom_call.1} parent=11 // pred_region
          _
        $region20: #{tpu_custom_call.1} parent=11 // pred_fallthru
          _
      $region12: #{tpu_custom_call.1} parent=5 // pred_fallthru
        _
      %p197 = scmp.lt.s32.totalorder %s14, 2
      // Predicated region
      $region21: #{tpu_custom_call.1} parent=5 // pred_check
        %p198 = pneg %p197
      $region22: #{tpu_custom_call.1} parent=5 // pred_check_branch
        %200 = sbr.rel (%p198) target = $region24
      $region23: #{tpu_custom_call.1} parent=5 // pred_region
        // Predicated region
        $region25: #{tpu_custom_call.1} parent=23 // pred_check
          %p201 = pneg %p48
        $region26: #{tpu_custom_call.1} parent=23 // pred_check_branch
          %203 = sbr.rel (%p201) target = $region28
        $region27: #{tpu_custom_call.1} parent=23 // pred_region
          %p204 = scmp.lt.s32.totalorder %s21, 1
          %s205 = scalar_select %p204, %s21, 1
          %p206 = scmp.lt.s32.totalorder %s22, 0
          %s207 = scalar_select %p206, %s22, 0
          %s208 = sadd.s32 %s207, %s205
          %s209 = smul.addr %s208, 8
          %s210 = scalar_lea.vmem %s0, %s209
        $region28: #{tpu_custom_call.1} parent=23 // pred_fallthru
          _
        // Predicated region
        $region29: #{tpu_custom_call.1} parent=23 // pred_check
          %p211 = pneg %p74
        $region30: #{tpu_custom_call.1} parent=23 // pred_check_branch
          %213 = sbr.rel (%p211) target = $region32
        $region31: #{tpu_custom_call.1} parent=23 // pred_region
          %p214 = scmp.lt.s32.totalorder %s21, 1
          %s215 = scalar_select %p214, %s21, 1
          %s216 = scalar_lea.vmem %s1, %s215
        $region32: #{tpu_custom_call.1} parent=23 // pred_fallthru
          _
        // Predicated region
        $region33: #{tpu_custom_call.1} parent=23 // pred_check
          %p217 = pneg %p100
        $region34: #{tpu_custom_call.1} parent=23 // pred_check_branch
          %219 = sbr.rel (%p217) target = $region36
        $region35: #{tpu_custom_call.1} parent=23 // pred_region
          %p220 = scmp.lt.s32.totalorder %s21, 1
          %s221 = scalar_select %p220, %s21, 1
          %s222 = scalar_lea.vmem %s2, %s221
        $region36: #{tpu_custom_call.1} parent=23 // pred_fallthru
          _
      $region24: #{tpu_custom_call.1} parent=5 // pred_fallthru
        _
      %p223 = scmp.le.s32.totalorder 1, %s14
      %p224 = scmp.lt.s32.totalorder %s14, 3
      %p225 = pnand %p223, %p224
      %p226 = pneg %p225
      // Predicated region
      $region37: #{tpu_custom_call.1} parent=5 // pred_check
        _
      $region38: #{tpu_custom_call.1} parent=5 // pred_check_branch
        %228 = sbr.rel (%p225) target = $region40
      $region39: #{tpu_custom_call.1} parent=5 // pred_region
        %s229 = ssub.s32 %s14, 1
        %p230 = scmp.lt.s32.totalorder %s23, 1
        %s231 = scalar_select %p230, %s23, 1
        %p232 = scmp.lt.s32.totalorder %s24, 0
        %s233 = scalar_select %p232, %s24, 0
        %s234 = sadd.s32 %s233, %s231
        %s235 = smul.addr %s234, 8
        %s236 = scalar_lea.vmem %s0, %s235
        %p237 = pneg %p54
        %p238 = pneg %p51
        %p239 = scmp.lt.s32.totalorder %s23, 1
        %s240 = scalar_select %p239, %s23, 1
        %s241 = scalar_lea.vmem %s1, %s240
        %p242 = pneg %p80
        %p243 = pneg %p77
        %p244 = scmp.lt.s32.totalorder %s23, 1
        %s245 = scalar_select %p244, %s23, 1
        %s246 = scalar_lea.vmem %s2, %s245
        %p247 = pneg %p106
        %p248 = pneg %p103
        %p249 = pneg %p127
        %p250 = pneg %p124
        %p251 = pneg %p148
        %p252 = pneg %p145
        %p253 = pneg %p176
        %p254 = pneg %p173
        %s255 = sand.u32 %s163, 1
        %s256 = scalar_lea.sflag [#allocation3], %s255
        %s257 = sand.u32 %s163, 1
        %s258 = smul.addr %s257, 8
        %s259 = scalar_lea.vmem [#allocation2], %s258
        %p260 = scmp.lt.s32.totalorder %s23, 1
        %s261 = scalar_select %p260, %s23, 1
        %p262 = scmp.lt.s32.totalorder %s24, 0
        %s263 = scalar_select %p262, %s24, 0
        %s264 = sadd.s32 %s263, %s261
        %s265 = smul.addr %s264, 8
        %s266 = scalar_lea.vmem %s0, %s265
        %p267 = scmp.lt.s32.totalorder %s23, 1
        %s268 = scalar_select %p267, %s23, 1
        %s269 = scalar_lea.vmem %s1, %s268
        %p270 = scmp.lt.s32.totalorder %s23, 1
        %s271 = scalar_select %p270, %s23, 1
        %s272 = scalar_lea.vmem %s2, %s271
        %v273 = vld [vmem:[%s266] sm:$0xff]
        %vm274 = vcmask 261120
        %v275 = vsel %vm274, %v273, 0.0
        %276 = vadd.xlane.f32.xlu0 %v275
        %v277 = vpop.xlane.xlu0 %276
        %v278 = vrcp.pop 32.0
        %v279 = vmul.f32 %v277, %v278
        %v280 = vmul.f32 %v273, %v273
        %v281 = vsel %vm274, %v280, 0.0
        %282 = vadd.xlane.f32.xlu0 %v281
        %v283 = vpop.xlane.xlu0 %282
        %v284 = vmul.f32 %v283, %v278
        %v285 = vmul.f32 %v279, %v279
        %v286 = vsub.f32 %v284, %v285
        %v287 = vmax.f32 %v286, 0.0
        %v288 = vadd.f32 %v287, 1e-05
        %v289 = vrsqrt.pop %v288
        %v290 = vld [vmem:[%s272] sm:$0x1]
        %v291 = vld [vmem:[%s269] sm:$0x1]
        %v293 = vlaneseq
        %v294 = vshrl.u32 %v293, 7
        %v295 = vsub.s32 0, %v294
        %v296 = vrot.slane %v290, %v295
        %v298 = vmul.f32 %v289, %v296
        %v299 = vmul.f32 %v273, %v298
        %v300 = vmul.f32 %v279, %v298
        %v302 = vlaneseq
        %v303 = vshrl.u32 %v302, 7
        %v304 = vsub.s32 0, %v303
        %v305 = vrot.slane %v291, %v304
        %v307 = vsub.f32 %v305, %v300
        %v308 = vadd.f32 %v299, %v307
        %v309 = vld [vmem:[%s3] sm:$0xff]
        %v310 = vld [vmem:[%s3 + $0x8] sm:$0xff]
        %v311 = vld [vmem:[%s3 + $0x10] sm:$0xff]
        %v312 = vld [vmem:[%s3 + $0x18] sm:$0xff]
        %v313 = vld [vmem:[%s4] sm:$0x1]
        %v315 = vlaneseq
        %v316 = vshrl.u32 %v315, 7
        %v317 = vsub.s32 0, %v316
        %v318 = vrot.slane %v313, %v317
        %v321 = vsel %vm274, %v308, 0
        %323 = vmatprep.subr.mxu0 0.0
        %324 = vmatpush1.msra.mxu0 %v309
        %325 = vmatprep.subr.mxu0 0.0
        %326 = vmatpush1.msra.mxu0 %v310
        %327 = vmatprep.subr.mxu0 0.0
        %328 = vmatpush1.msra.mxu0 %v311
        %329 = vmatprep.subr.mxu0 0.0
        %330 = vmatpush1.msra.mxu0 %v312
        %331 = vmatprep.subr.mxu0 0.0
        %332 = vmatpush1.msra.mxu0 0.0
        %333 = vmatprep.subr.mxu0 0.0
        %334 = vmatpush1.msra.mxu0 0.0
        %335 = vmatprep.subr.mxu0 0.0
        %336 = vmatpush1.msra.mxu0 0.0
        %337 = vmatprep.subr.mxu0 0.0
        %338 = vmatpush1.msra.mxu0 0.0
        %339 = vmatprep.subr.mxu0 0.0
        %340 = vmatpush1.msra.mxu0 0.0
        %341 = vmatprep.subr.mxu0 0.0
        %342 = vmatpush1.msra.mxu0 0.0
        %343 = vmatprep.subr.mxu0 0.0
        %344 = vmatpush1.msra.mxu0 0.0
        %345 = vmatprep.subr.mxu0 0.0
        %346 = vmatpush1.msra.mxu0 0.0
        %347 = vmatprep.subr.mxu0 0.0
        %348 = vmatpush1.msra.mxu0 0.0
        %349 = vmatprep.subr.mxu0 0.0
        %350 = vmatpush1.msra.mxu0 0.0
        %351 = vmatprep.subr.mxu0 0.0
        %352 = vmatpush1.msra.mxu0 0.0
        %353 = vmatprep.subr.mxu0 0.0
        %354 = vmatpush1.msra.mxu0 0.0
        %355 = vmatprep.subr.mxu0 0.0
        %356 = vmatpush1.msra.mxu0 0.0
        %357 = vmatprep.subr.mxu0 0.0
        %358 = vmatpush1.msra.mxu0 0.0
        %359 = vmatprep.subr.mxu0 0.0
        %360 = vmatpush1.msra.mxu0 0.0
        %361 = vmatprep.subr.mxu0 0.0
        %362 = vmatpush1.msra.mxu0 0.0
        %363 = vmatprep.subr.mxu0 0.0
        %364 = vmatpush1.msra.mxu0 0.0
        %365 = vmatprep.subr.mxu0 0.0
        %366 = vmatpush1.msra.mxu0 0.0
        %367 = vmatprep.subr.mxu0 0.0
        %368 = vmatpush1.msra.mxu0 0.0
        %369 = vmatprep.subr.mxu0 0.0
        %370 = vmatpush1.msra.mxu0 0.0
        %371 = vmatprep.subr.mxu0 0.0
        %372 = vmatpush1.msra.mxu0 0.0
        %373 = vmatprep.subr.mxu0 0.0
        %374 = vmatpush1.msra.mxu0 0.0
        %375 = vmatprep.subr.mxu0 0.0
        %376 = vmatpush1.msra.mxu0 0.0
        %377 = vmatprep.subr.mxu0 0.0
        %378 = vmatpush1.msra.mxu0 0.0
        %379 = vmatprep.subr.mxu0 0.0
        %380 = vmatpush1.msra.mxu0 0.0
        %381 = vmatprep.subr.mxu0 0.0
        %382 = vmatpush1.msra.mxu0 0.0
        %383 = vmatprep.subr.mxu0 0.0
        %384 = vmatpush1.msra.mxu0 0.0
        %385 = vmatprep.subr.mxu0 0.0
        %386 = vmatpush1.msra.mxu0 0.0
        %387 = vmatprep.mubr.f32.mxu0 0.0
        %388 = vmatmul.mubr.f32.gmra.mrb[0].mxu0 %v321
        %v389 = vpop.f32.mrb[0].mxu0
        %v390 = vadd.f32 %v318, %v389
        %v391 = vpop.f32.mrb[0].mxu0
        %392 = vdwg.mxu0
        %vm393 = vcmask 64512
        %394 = vst.msk [vmem:[%s259] sm:$0xff] %vm393, %v390
        %s395 = sand.u32 %s163, 1
        %s396 = scalar_lea.sflag [#allocation3], %s395
        %s397 = sand.u32 %s163, 1
        %s398 = smul.addr %s397, 8
        %s399 = scalar_lea.vmem [#allocation2], %s398
        // Predicated region
        $region41: #{tpu_custom_call.1} parent=39 // pred_check
          %p400 = pneg %p173
        $region42: #{tpu_custom_call.1} parent=39 // pred_check_branch
          %402 = sbr.rel (%p400) target = $region44
        $region43: #{tpu_custom_call.1} parent=39 // pred_region
          %s404 = ssub.s32 128, 128
          %405 = vsyncadd %s396, %s404
          %s406 = sadd.s32 %s24, %s23
          %s407 = smul.addr %s406, 128
          %s408 = scalar_lea.hbm %s5, %s407
          %s410 = sshll.u32 %s399, 4
          %s411 = int_to_ptr.vmem [resolvable:$true] %s410
          %413 = dma.vmem_to_hbm [thread:$0]  %s411, 128, %s408, %s396
        $region44: #{tpu_custom_call.1} parent=39 // pred_fallthru
          _
      $region40: #{tpu_custom_call.1} parent=5 // pred_fallthru
        _
      %p414 = scmp.le.s32.totalorder 2, %s14
      // Predicated region
      $region45: #{tpu_custom_call.1} parent=5 // pred_check
        %p415 = pneg %p414
      $region46: #{tpu_custom_call.1} parent=5 // pred_check_branch
        %417 = sbr.rel (%p415) target = $region48
      $region47: #{tpu_custom_call.1} parent=5 // pred_region
        %s418 = ssub.s32 %s14, 2
        // Predicated region
        $region49: #{tpu_custom_call.1} parent=47 // pred_check
          %p419 = pneg %p179
        $region50: #{tpu_custom_call.1} parent=47 // pred_check_branch
          %421 = sbr.rel (%p419) target = $region52
        $region51: #{tpu_custom_call.1} parent=47 // pred_region
          %s422 = sand.u32 %s164, 1
          %s423 = scalar_lea.sflag [#allocation3], %s422
          %s424 = sand.u32 %s164, 1
          %s425 = smul.addr %s424, 8
          %s426 = scalar_lea.vmem [#allocation2], %s425
          %427 = dma.done %s423, 128
        $region52: #{tpu_custom_call.1} parent=47 // pred_fallthru
          _
      $region48: #{tpu_custom_call.1} parent=5 // pred_fallthru
        _
    $region6: #{tpu_custom_call.1} parent=1 // loop_footer
      %s18 = sadd.s32 1, %s14
    $region7: #{tpu_custom_call.1} parent=1 // loop_footer_branch
      %13 = sbr.rel target = $region3
    $region8: #{tpu_custom_call.1} parent=1 // loop_exit
      _
    %428 = vsyncpa [#allocation3], 1
    %s429 = scalar_lea.sflag [#allocation3], 1
    %430 = vsyncpa %s429, 1

</llo_original>
